<compile_context>
chip_gen: v5e
topology: v5e:2x2
jax: 0.10.0
libtpu: 0.0.40
codegen_flags: <defaults>
</compile_context>

<pallas_src>
import functools
import re

import jax
import jax.numpy as jnp
from jax.experimental import pallas as pl
from jax.experimental.pallas import tpu as pltpu


def _bahdanau_kernel(q_ref, k_ref, wat_ref, qb_ref, uat_ref, va_ref,
                     ctx_ref, w_ref, *, s_valid, tanh_dtype, exact):
    """One batch tile per grid step.

    q_ref  : (TB, H)     query rows (compute dtype)
    k_ref  : (TB, S, H)  key rows, S possibly padded (compute dtype)
    wat_ref: (H, H)      Wa.weight^T (compute dtype)
    qb_ref : (1, H)      Wa.bias + Ua.bias (f32, folded)
    uat_ref: (H, H)      Ua.weight^T (compute dtype)
    va_ref : (1, H)      Va.weight row (f32)
    ctx_ref: (TB, H)     context out
    w_ref  : (TB, S)     attention weights out (lane-dense on S)
    """
    TB, S, H = k_ref.shape

    q = q_ref[...]                                    # (TB, H)
    k = k_ref[...]                                    # (TB, S, H)
    k2 = k.reshape(TB * S, H)                         # free view (S padded to sublane tile)

    # Projections on the MXU, f32 accumulation.  Biases folded into the query
    # projection only (the broadcast add below distributes them to every key
    # position).  Va.bias is dropped entirely (no effect under softmax).
    q_proj = jnp.dot(q, wat_ref[...],
                     preferred_element_type=jnp.float32) + qb_ref[...]       # (TB, H)
    k_proj = jnp.dot(k2, uat_ref[...],
                     preferred_element_type=jnp.float32)                     # (TB*S, H)

    pre = k_proj.reshape(TB, S, H) + q_proj[:, None, :]                      # (TB, S, H) f32
    t = jnp.tanh(pre.astype(tanh_dtype)).astype(jnp.float32)                 # EUP

    # Va scoring: VPU multiply + lane-axis reduce (keeps the MXU for projections).
    scores = jnp.sum(t * va_ref[...].astype(jnp.float32), axis=-1)           # (TB, S)

    if s_valid < S:  # mask padded key positions (static condition)
        col = jax.lax.broadcasted_iota(jnp.int32, (TB, S), 1)
        scores = jnp.where(col < s_valid, scores, jnp.float32(-1e30))

    # Softmax over the key (lane) axis.
    m = jnp.max(scores, axis=-1, keepdims=True)
    e = jnp.exp(scores - m)
    denom = jnp.sum(e, axis=-1, keepdims=True)
    if exact:
        w = e / denom
    else:
        w = e * pl.reciprocal(denom, approx=True)

    # context = weights @ keys, batched on the MXU.
    ctx = jnp.einsum('bqs,bsh->bqh', w.astype(k.dtype)[:, None, :], k,
                     preferred_element_type=jnp.float32)                     # (TB, 1, H)

    ctx_ref[...] = ctx.reshape(TB, H).astype(ctx_ref.dtype)
    w_ref[...] = w.astype(w_ref.dtype)


def _tpu_generation(default=6):
    """Best-effort TPU generation from device_kind ('TPU v5 lite', 'TPU v6e', 'TPU7x'...)."""
    try:
        kind = jax.devices()[0].device_kind
        m = re.search(r"(\d+)", kind)
        if m:
            return int(m.group(1))
    except Exception:
        pass
    return default


def _vmem_budget_and_limit(gen):
    if gen >= 7:            # v7x: 64 MiB physical per TensorCore
        return 28 << 20, 48 << 20
    if gen == 6:            # v6e: 128 MiB physical
        return 40 << 20, 80 << 20
    return 12 << 20, 24 << 20   # v5e / older: stay near the 16 MiB scoped default


def _pick_batch_tile(B, S, H, k_itemsize, out_itemsize, gen, key_buffers,
                     vmem_budget_bytes):
    """Largest TB (dividing B, sublane-legal) whose tile working set fits the budget."""
    # Weight residency (up to 2 buffers each) + bias/Va rows.
    const_bytes = 2 * H * H * k_itemsize * 2 + 2 * H * 4 * 2

    def tile_bytes(tb):
        keys_b = tb * S * H * k_itemsize * key_buffers     # keys DMA buffers
        q_b = tb * H * k_itemsize * 2                       # query DMA buffers
        out_b = (tb * H + tb * S) * out_itemsize * 2        # output buffers
        interm = 3 * tb * S * H * 4                         # f32 k_proj / pre / t
        return keys_b + q_b + out_b + interm + const_bytes

    cands = [tb for tb in range(1, B + 1)
             if B % tb == 0 and (tb == B or tb % 8 == 0)]
    if gen >= 7:
        # Keep >= 2 (even) grid steps so ("parallel",) can shard across both TCs.
        split = [tb for tb in cands if (B // tb) >= 2 and (B // tb) % 2 == 0]
        if split:
            cands = split
    fit = [tb for tb in cands if tile_bytes(tb) <= vmem_budget_bytes]
    return max(fit) if fit else min(cands)


def bahdanau_attention(query, keys, params, *, batch_tile=None,
                       compute_dtype=jnp.bfloat16):
    """query (B,1,H), keys (B,S,H) -> (context (B,1,H), weights (B,1,S)).

    compute_dtype: dtype of query/keys/Wa^T/Ua^T MXU operands (f32 accumulation,
    f32 biases/Va always).  Default bf16 (MXU-native); pass None for exact f32.
    """
    B, one, H = query.shape
    assert one == 1, "query must have a singleton time dimension"
    S = keys.shape[1]
    waw, wab, uaw, uab, vaw, vab = params
    del vab  # exact: Va.bias shifts every score equally -> no effect after softmax

    gen = _tpu_generation()
    exact = compute_dtype is None
    cdt = jnp.dtype(query.dtype) if exact else jnp.dtype(compute_dtype)

    # One-time host-side layout prep (hoisted out of the grid loop).
    wa_t = jnp.asarray(waw).T.astype(cdt)                                  # (H, H)
    ua_t = jnp.asarray(uaw).T.astype(cdt)                                  # (H, H)
    qbias = (jnp.asarray(wab, jnp.float32)
             + jnp.asarray(uab, jnp.float32)).reshape(1, H)                # folded bias, f32
    va_row = jnp.asarray(vaw, jnp.float32).reshape(1, H)                   # Va stays f32

    q2 = query.reshape(B, H).astype(cdt)
    k_in = keys.astype(cdt)

    # Pad S to the sublane tile so the in-kernel (TB,S,H)<->(TB*S,H) collapse is free.
    k_itemsize = cdt.itemsize
    sublane = max(8, 32 // k_itemsize)
    S_pad = ((S + sublane - 1) // sublane) * sublane
    if S_pad != S:
        k_in = jnp.pad(k_in, ((0, 0), (0, S_pad - S), (0, 0)))

    vmem_budget, vmem_limit = _vmem_budget_and_limit(gen)
    keys_buffers = 3 if (gen == 6 and not exact) else 2
    if batch_tile is None:
        batch_tile = _pick_batch_tile(B, S_pad, H, k_itemsize,
                                      jnp.dtype(query.dtype).itemsize,
                                      gen, keys_buffers, vmem_budget)
    TB = batch_tile
    assert B % TB == 0 and (TB == B or TB % 8 == 0), \
        "batch_tile must divide B and be a multiple of 8 (or equal B)"
    grid = (B // TB,)

    tanh_dtype = jnp.bfloat16 if (not exact and gen >= 6) else jnp.float32
    kernel = functools.partial(_bahdanau_kernel, s_valid=S,
                               tanh_dtype=tanh_dtype, exact=exact)

    out_shape = (jax.ShapeDtypeStruct((B, H), query.dtype),
                 jax.ShapeDtypeStruct((B, S_pad), query.dtype))
    full2d = lambda b: (0, 0)

    def run(use_pipeline_modes):
        const_kw, keys_kw = {}, {}
        if use_pipeline_modes:
            const_kw = dict(pipeline_mode=pl.Buffered(1))   # constants: no dead 2nd buffer
            if keys_buffers != 2:
                keys_kw = dict(pipeline_mode=pl.Buffered(keys_buffers))
        grid_spec = pltpu.PrefetchScalarGridSpec(
            num_scalar_prefetch=0,
            grid=grid,
            in_specs=[
                pl.BlockSpec((TB, H), lambda b: (b, 0)),                      # query tile
                pl.BlockSpec((TB, S_pad, H), lambda b: (b, 0, 0), **keys_kw), # keys tile
                pl.BlockSpec((H, H), full2d, **const_kw),                     # Wa^T
                pl.BlockSpec((1, H), full2d, **const_kw),                     # folded bias
                pl.BlockSpec((H, H), full2d, **const_kw),                     # Ua^T
                pl.BlockSpec((1, H), full2d, **const_kw),                     # Va row
            ],
            out_specs=[
                pl.BlockSpec((TB, H), lambda b: (b, 0)),                      # context
                pl.BlockSpec((TB, S_pad), lambda b: (b, 0)),                  # weights
            ],
        )
        return pl.pallas_call(
            kernel,
            out_shape=out_shape,
            grid_spec=grid_spec,
            compiler_params=pltpu.CompilerParams(
                dimension_semantics=("parallel",),
                vmem_limit_bytes=vmem_limit),
        )(q2, k_in, wa_t, qbias, ua_t, va_row)

    try:
        ctx2, w2 = run(True)
        jax.block_until_ready((ctx2, w2))
    except Exception:
        # Older JAX without BlockSpec pipeline_mode / Buffered(1): default buffering.
        ctx2, w2 = run(False)

    context = ctx2.reshape(B, 1, H)
    weights = w2[:, :S].reshape(B, 1, S)
    return context, weights


def _reference(query, keys, params):
    waw, wab, uaw, uab, vaw, vab = params
    qp = query @ waw.T + wab                      # (B,1,H)
    kp = keys @ uaw.T + uab                       # (B,S,H)
    t = jnp.tanh(qp + kp)                         # (B,S,H)
    scores = t @ vaw.T + vab                      # (B,S,1)
    scores = jnp.swapaxes(scores, 1, 2)           # (B,1,S)
    w = jax.nn.softmax(scores, axis=-1)
    ctx = jnp.einsum("bqs,bsh->bqh", w, keys)
    return ctx, w


def _init_params(key, hidden):
    # PyTorch nn.Linear default init: U(-1/sqrt(fan_in), +1/sqrt(fan_in)).
    ks = jax.random.split(key, 6)
    bnd = 1.0 / jnp.sqrt(hidden)
    waw = jax.random.uniform(ks[0], (hidden, hidden), jnp.float32, -bnd, bnd)
    wab = jax.random.uniform(ks[1], (hidden,), jnp.float32, -bnd, bnd)
    uaw = jax.random.uniform(ks[2], (hidden, hidden), jnp.float32, -bnd, bnd)
    uab = jax.random.uniform(ks[3], (hidden,), jnp.float32, -bnd, bnd)
    vaw = jax.random.uniform(ks[4], (1, hidden), jnp.float32, -bnd, bnd)
    vab = jax.random.uniform(ks[5], (1,), jnp.float32, -bnd, bnd)
    return waw, wab, uaw, uab, vaw, vab


if __name__ == "__main__":
    B, S, H = 2, 8, 32
    key = jax.random.PRNGKey(0)
    kq, kk, kp = jax.random.split(key, 3)
    query = jax.random.normal(kq, (B, 1, H), jnp.float32)
    keys = jax.random.normal(kk, (B, S, H), jnp.float32)
    params = _init_params(kp, H)

    ctx_gold, w_gold = _reference(query, keys, params)

    # Exact f32 path (tight tolerance).
    ctx, w = bahdanau_attention(query, keys, params, compute_dtype=None)
    jax.block_until_ready((ctx, w))
    assert ctx.shape == (B, 1, H) and w.shape == (B, 1, S)
    assert jnp.allclose(ctx, ctx_gold, atol=1e-4, rtol=1e-4), "context mismatch (f32)"
    assert jnp.allclose(w, w_gold, atol=1e-4, rtol=1e-4), "weights mismatch (f32)"

    # Default bf16-compute path (also exercises S-padding + masking); loose tolerance.
    ctx_bf, w_bf = bahdanau_attention(query, keys, params)
    jax.block_until_ready((ctx_bf, w_bf))
    assert ctx_bf.shape == (B, 1, H) and w_bf.shape == (B, 1, S)
    assert jnp.allclose(ctx_bf.astype(jnp.float32), ctx_gold,
                        atol=6e-2, rtol=6e-2), "context mismatch (bf16)"
    assert jnp.allclose(w_bf.astype(jnp.float32), w_gold,
                        atol=6e-2, rtol=6e-2), "weights mismatch (bf16)"

    print("KERNEL_OK")
</pallas_src>

<mosaic_0001>
module attributes {stable_mosaic.version = 11 : i64} {
  func.func @_bahdanau_kernel(%arg0: i32, %arg1: memref<2x32xf32, #tpu.memory_space<vmem>>, %arg2: memref<2x8x32xf32, #tpu.memory_space<vmem>>, %arg3: memref<32x32xf32, #tpu.memory_space<vmem>>, %arg4: memref<1x32xf32, #tpu.memory_space<vmem>>, %arg5: memref<32x32xf32, #tpu.memory_space<vmem>>, %arg6: memref<1x32xf32, #tpu.memory_space<vmem>>, %arg7: memref<2x32xf32, #tpu.memory_space<vmem>>, %arg8: memref<2x8xf32, #tpu.memory_space<vmem>>) attributes {dimension_semantics = [#tpu.dimension_semantics<parallel>], iteration_bounds = array<i64: 1>, scalar_prefetch = 0 : i64, scratch_operands = 0 : i64, tpu.core_type = #tpu.core_type<tc>, window_params = [{transform_indices = @transform_0, window_bounds = array<i64: 2, 32>}, {transform_indices = @transform_1, window_bounds = array<i64: 2, 8, 32>}, {pipeline_mode = #tpu.pipeline_mode<synchronous>, transform_indices = @transform_2, window_bounds = array<i64: 32, 32>}, {pipeline_mode = #tpu.pipeline_mode<synchronous>, transform_indices = @transform_3, window_bounds = array<i64: 1, 32>}, {pipeline_mode = #tpu.pipeline_mode<synchronous>, transform_indices = @transform_4, window_bounds = array<i64: 32, 32>}, {pipeline_mode = #tpu.pipeline_mode<synchronous>, transform_indices = @transform_5, window_bounds = array<i64: 1, 32>}, {transform_indices = @transform_6, window_bounds = array<i64: 2, 32>}, {transform_indices = @transform_7, window_bounds = array<i64: 2, 8>}]} {
    %c0 = arith.constant 0 : index
    %c0_0 = arith.constant 0 : index
    %0 = vector.load %arg1[%c0, %c0_0] : memref<2x32xf32, #tpu.memory_space<vmem>>, vector<2x32xf32>
    %c0_1 = arith.constant 0 : index
    %c0_2 = arith.constant 0 : index
    %c0_3 = arith.constant 0 : index
    %1 = vector.load %arg2[%c0_1, %c0_2, %c0_3] : memref<2x8x32xf32, #tpu.memory_space<vmem>>, vector<2x8x32xf32>
    %2 = vector.shape_cast %1 : vector<2x8x32xf32> to vector<16x32xf32>
    %c0_4 = arith.constant 0 : index
    %c0_5 = arith.constant 0 : index
    %3 = vector.load %arg3[%c0_4, %c0_5] : memref<32x32xf32, #tpu.memory_space<vmem>>, vector<32x32xf32>
    %cst = arith.constant dense<0.000000e+00> : vector<2x32xf32>
    %4 = tpu.matmul %0, %3, %cst {dimension_numbers = #tpu.dot_dimension_numbers<[1], [0], [0], [1], [0, 0, 1, 1], [], []>} : vector<2x32xf32>, vector<32x32xf32>, vector<2x32xf32> -> vector<2x32xf32>
    %c0_6 = arith.constant 0 : index
    %c0_7 = arith.constant 0 : index
    %5 = vector.load %arg4[%c0_6, %c0_7] : memref<1x32xf32, #tpu.memory_space<vmem>>, vector<1x32xf32>
    %6 = vector.broadcast %5 : vector<1x32xf32> to vector<2x32xf32>
    %7 = arith.addf %4, %6 : vector<2x32xf32>
    %c0_8 = arith.constant 0 : index
    %c0_9 = arith.constant 0 : index
    %8 = vector.load %arg5[%c0_8, %c0_9] : memref<32x32xf32, #tpu.memory_space<vmem>>, vector<32x32xf32>
    %cst_10 = arith.constant dense<0.000000e+00> : vector<16x32xf32>
    %9 = tpu.matmul %2, %8, %cst_10 {dimension_numbers = #tpu.dot_dimension_numbers<[1], [0], [0], [1], [0, 0, 1, 1], [], []>} : vector<16x32xf32>, vector<32x32xf32>, vector<16x32xf32> -> vector<16x32xf32>
    %10 = vector.shape_cast %9 : vector<16x32xf32> to vector<2x8x32xf32>
    %11 = vector.shape_cast %7 : vector<2x32xf32> to vector<2x1x32xf32>
    %12 = vector.broadcast %11 : vector<2x1x32xf32> to vector<2x8x32xf32>
    %13 = arith.addf %10, %12 : vector<2x8x32xf32>
    %14 = math.tanh %13 : vector<2x8x32xf32>
    %c0_11 = arith.constant 0 : index
    %c0_12 = arith.constant 0 : index
    %15 = vector.load %arg6[%c0_11, %c0_12] : memref<1x32xf32, #tpu.memory_space<vmem>>, vector<1x32xf32>
    %16 = vector.shape_cast %15 : vector<1x32xf32> to vector<1x1x32xf32>
    %17 = vector.broadcast %16 : vector<1x1x32xf32> to vector<2x8x32xf32>
    %18 = arith.mulf %14, %17 : vector<2x8x32xf32>
    %cst_13 = arith.constant dense<0.000000e+00> : vector<2x8xf32>
    %19 = vector.multi_reduction <add>, %18, %cst_13 [2] : vector<2x8x32xf32> to vector<2x8xf32>
    %cst_14 = arith.constant dense<0xFF800000> : vector<2xf32>
    %20 = vector.multi_reduction <maximumf>, %19, %cst_14 [1] : vector<2x8xf32> to vector<2xf32>
    %21 = vector.shape_cast %20 : vector<2xf32> to vector<2x1xf32>
    %22 = vector.broadcast %21 : vector<2x1xf32> to vector<2x8xf32>
    %23 = arith.subf %19, %22 : vector<2x8xf32>
    %24 = math.exp %23 : vector<2x8xf32>
    %cst_15 = arith.constant dense<0.000000e+00> : vector<2xf32>
    %25 = vector.multi_reduction <add>, %24, %cst_15 [1] : vector<2x8xf32> to vector<2xf32>
    %26 = vector.shape_cast %25 : vector<2xf32> to vector<2x1xf32>
    %27 = vector.broadcast %26 : vector<2x1xf32> to vector<2x8xf32>
    %28 = arith.divf %24, %27 : vector<2x8xf32>
    %29 = vector.shape_cast %28 : vector<2x8xf32> to vector<2x1x8xf32>
    "tpu.trace_start"() <{level = 10 : i32, message = "bqs,bsh->bqh"}> : () -> ()
    %cst_16 = arith.constant dense<0.000000e+00> : vector<2x1x32xf32>
    %30 = tpu.matmul %29, %1, %cst_16 {dimension_numbers = #tpu.dot_dimension_numbers<[2], [1], [1], [2], [0, 0, 0, 1, 1, 2], [0], [0]>} : vector<2x1x8xf32>, vector<2x8x32xf32>, vector<2x1x32xf32> -> vector<2x1x32xf32>
    "tpu.trace_stop"() : () -> ()
    %31 = vector.shape_cast %30 : vector<2x1x32xf32> to vector<2x32xf32>
    %c0_17 = arith.constant 0 : index
    %c0_18 = arith.constant 0 : index
    %32 = vector.load %arg7[%c0_17, %c0_18] : memref<2x32xf32, #tpu.memory_space<vmem>>, vector<2x32xf32>
    tpu.vector_store %arg7[%c0_17, %c0_18], %31 {strides = array<i32>} : memref<2x32xf32, #tpu.memory_space<vmem>>, vector<2x32xf32>,
    %c0_19 = arith.constant 0 : index
    %c0_20 = arith.constant 0 : index
    %33 = vector.load %arg8[%c0_19, %c0_20] : memref<2x8xf32, #tpu.memory_space<vmem>>, vector<2x8xf32>
    tpu.vector_store %arg8[%c0_19, %c0_20], %28 {strides = array<i32>} : memref<2x8xf32, #tpu.memory_space<vmem>>, vector<2x8xf32>,
    return
  }
  func.func @transform_0(%arg0: i32) -> (i32, i32) {
    %c0_i32 = arith.constant 0 : i32
    %c0_i32_0 = arith.constant 0 : i32
    return %arg0, %c0_i32 : i32, i32
  }
  func.func @transform_1(%arg0: i32) -> (i32, i32, i32) {
    %c0_i32 = arith.constant 0 : i32
    %c0_i32_0 = arith.constant 0 : i32
    %c0_i32_1 = arith.constant 0 : i32
    return %arg0, %c0_i32, %c0_i32_0 : i32, i32, i32
  }
  func.func @transform_2(%arg0: i32) -> (i32, i32) {
    %c0_i32 = arith.constant 0 : i32
    %c0_i32_0 = arith.constant 0 : i32
    %c0_i32_1 = arith.constant 0 : i32
    return %c0_i32, %c0_i32_0 : i32, i32
  }
  func.func @transform_3(%arg0: i32) -> (i32, i32) {
    %c0_i32 = arith.constant 0 : i32
    %c0_i32_0 = arith.constant 0 : i32
    %c0_i32_1 = arith.constant 0 : i32
    return %c0_i32, %c0_i32_0 : i32, i32
  }
  func.func @transform_4(%arg0: i32) -> (i32, i32) {
    %c0_i32 = arith.constant 0 : i32
    %c0_i32_0 = arith.constant 0 : i32
    %c0_i32_1 = arith.constant 0 : i32
    return %c0_i32, %c0_i32_0 : i32, i32
  }
  func.func @transform_5(%arg0: i32) -> (i32, i32) {
    %c0_i32 = arith.constant 0 : i32
    %c0_i32_0 = arith.constant 0 : i32
    %c0_i32_1 = arith.constant 0 : i32
    return %c0_i32, %c0_i32_0 : i32, i32
  }
  func.func @transform_6(%arg0: i32) -> (i32, i32) {
    %c0_i32 = arith.constant 0 : i32
    %c0_i32_0 = arith.constant 0 : i32
    return %arg0, %c0_i32 : i32, i32
  }
  func.func @transform_7(%arg0: i32) -> (i32, i32) {
    %c0_i32 = arith.constant 0 : i32
    %c0_i32_0 = arith.constant 0 : i32
    return %arg0, %c0_i32 : i32, i32
  }
}

module attributes {stable_mosaic.version = 11 : i64} {
  func.func @_bahdanau_kernel(%arg0: i32, %arg1: memref<2x32xf32, #tpu.memory_space<vmem>>, %arg2: memref<2x8x32xf32, #tpu.memory_space<vmem>>, %arg3: memref<32x32xf32, #tpu.memory_space<vmem>>, %arg4: memref<1x32xf32, #tpu.memory_space<vmem>>, %arg5: memref<32x32xf32, #tpu.memory_space<vmem>>, %arg6: memref<1x32xf32, #tpu.memory_space<vmem>>, %arg7: memref<2x32xf32, #tpu.memory_space<vmem>>, %arg8: memref<2x8xf32, #tpu.memory_space<vmem>>) attributes {dimension_semantics = [#tpu.dimension_semantics<parallel>], iteration_bounds = array<i64: 1>, scalar_prefetch = 0 : i64, scratch_operands = 0 : i64, tpu.core_type = #tpu.core_type<tc>, window_params = [{transform_indices = @transform_0, window_bounds = array<i64: 2, 32>}, {transform_indices = @transform_1, window_bounds = array<i64: 2, 8, 32>}, {pipeline_mode = #tpu.pipeline_mode<synchronous>, transform_indices = @transform_2, window_bounds = array<i64: 32, 32>}, {pipeline_mode = #tpu.pipeline_mode<synchronous>, transform_indices = @transform_3, window_bounds = array<i64: 1, 32>}, {pipeline_mode = #tpu.pipeline_mode<synchronous>, transform_indices = @transform_4, window_bounds = array<i64: 32, 32>}, {pipeline_mode = #tpu.pipeline_mode<synchronous>, transform_indices = @transform_5, window_bounds = array<i64: 1, 32>}, {transform_indices = @transform_6, window_bounds = array<i64: 2, 32>}, {transform_indices = @transform_7, window_bounds = array<i64: 2, 8>}]} {
    %c0 = arith.constant 0 : index
    %c0_0 = arith.constant 0 : index
    %0 = vector.load %arg1[%c0, %c0_0] : memref<2x32xf32, #tpu.memory_space<vmem>>, vector<2x32xf32>
    %c0_1 = arith.constant 0 : index
    %c0_2 = arith.constant 0 : index
    %c0_3 = arith.constant 0 : index
    %1 = vector.load %arg2[%c0_1, %c0_2, %c0_3] : memref<2x8x32xf32, #tpu.memory_space<vmem>>, vector<2x8x32xf32>
    %2 = vector.shape_cast %1 : vector<2x8x32xf32> to vector<16x32xf32>
    %c0_4 = arith.constant 0 : index
    %c0_5 = arith.constant 0 : index
    %3 = vector.load %arg3[%c0_4, %c0_5] : memref<32x32xf32, #tpu.memory_space<vmem>>, vector<32x32xf32>
    %cst = arith.constant dense<0.000000e+00> : vector<2x32xf32>
    %4 = tpu.matmul %0, %3, %cst {dimension_numbers = #tpu.dot_dimension_numbers<[1], [0], [0], [1], [0, 0, 1, 1], [], []>} : vector<2x32xf32>, vector<32x32xf32>, vector<2x32xf32> -> vector<2x32xf32>
    %c0_6 = arith.constant 0 : index
    %c0_7 = arith.constant 0 : index
    %5 = vector.load %arg4[%c0_6, %c0_7] : memref<1x32xf32, #tpu.memory_space<vmem>>, vector<1x32xf32>
    %6 = vector.broadcast %5 : vector<1x32xf32> to vector<2x32xf32>
    %7 = arith.addf %4, %6 : vector<2x32xf32>
    %c0_8 = arith.constant 0 : index
    %c0_9 = arith.constant 0 : index
    %8 = vector.load %arg5[%c0_8, %c0_9] : memref<32x32xf32, #tpu.memory_space<vmem>>, vector<32x32xf32>
    %cst_10 = arith.constant dense<0.000000e+00> : vector<16x32xf32>
    %9 = tpu.matmul %2, %8, %cst_10 {dimension_numbers = #tpu.dot_dimension_numbers<[1], [0], [0], [1], [0, 0, 1, 1], [], []>} : vector<16x32xf32>, vector<32x32xf32>, vector<16x32xf32> -> vector<16x32xf32>
    %10 = vector.shape_cast %9 : vector<16x32xf32> to vector<2x8x32xf32>
    %11 = vector.shape_cast %7 : vector<2x32xf32> to vector<2x1x32xf32>
    %12 = vector.broadcast %11 : vector<2x1x32xf32> to vector<2x8x32xf32>
    %13 = arith.addf %10, %12 : vector<2x8x32xf32>
    %14 = math.tanh %13 : vector<2x8x32xf32>
    %c0_11 = arith.constant 0 : index
    %c0_12 = arith.constant 0 : index
    %15 = vector.load %arg6[%c0_11, %c0_12] : memref<1x32xf32, #tpu.memory_space<vmem>>, vector<1x32xf32>
    %16 = vector.shape_cast %15 : vector<1x32xf32> to vector<1x1x32xf32>
    %17 = vector.broadcast %16 : vector<1x1x32xf32> to vector<2x8x32xf32>
    %18 = arith.mulf %14, %17 : vector<2x8x32xf32>
    %cst_13 = arith.constant dense<0.000000e+00> : vector<2x8xf32>
    %19 = vector.multi_reduction <add>, %18, %cst_13 [2] : vector<2x8x32xf32> to vector<2x8xf32>
    %cst_14 = arith.constant dense<0xFF800000> : vector<2xf32>
    %20 = vector.multi_reduction <maximumf>, %19, %cst_14 [1] : vector<2x8xf32> to vector<2xf32>
    %21 = vector.shape_cast %20 : vector<2xf32> to vector<2x1xf32>
    %22 = vector.broadcast %21 : vector<2x1xf32> to vector<2x8xf32>
    %23 = arith.subf %19, %22 : vector<2x8xf32>
    %24 = math.exp %23 : vector<2x8xf32>
    %cst_15 = arith.constant dense<0.000000e+00> : vector<2xf32>
    %25 = vector.multi_reduction <add>, %24, %cst_15 [1] : vector<2x8xf32> to vector<2xf32>
    %26 = vector.shape_cast %25 : vector<2xf32> to vector<2x1xf32>
    %27 = vector.broadcast %26 : vector<2x1xf32> to vector<2x8xf32>
    %28 = arith.divf %24, %27 : vector<2x8xf32>
    %29 = vector.shape_cast %28 : vector<2x8xf32> to vector<2x1x8xf32>
    "tpu.trace_start"() <{level = 10 : i32, message = "bqs,bsh->bqh"}> : () -> ()
    %cst_16 = arith.constant dense<0.000000e+00> : vector<2x1x32xf32>
    %30 = tpu.matmul %29, %1, %cst_16 {dimension_numbers = #tpu.dot_dimension_numbers<[2], [1], [1], [2], [0, 0, 0, 1, 1, 2], [0], [0]>} : vector<2x1x8xf32>, vector<2x8x32xf32>, vector<2x1x32xf32> -> vector<2x1x32xf32>
    "tpu.trace_stop"() : () -> ()
    %31 = vector.shape_cast %30 : vector<2x1x32xf32> to vector<2x32xf32>
    %c0_17 = arith.constant 0 : index
    %c0_18 = arith.constant 0 : index
    %32 = vector.load %arg7[%c0_17, %c0_18] : memref<2x32xf32, #tpu.memory_space<vmem>>, vector<2x32xf32>
    tpu.vector_store %arg7[%c0_17, %c0_18], %31 {strides = array<i32>} : memref<2x32xf32, #tpu.memory_space<vmem>>, vector<2x32xf32>,
    %c0_19 = arith.constant 0 : index
    %c0_20 = arith.constant 0 : index
    %33 = vector.load %arg8[%c0_19, %c0_20] : memref<2x8xf32, #tpu.memory_space<vmem>>, vector<2x8xf32>
    tpu.vector_store %arg8[%c0_19, %c0_20], %28 {strides = array<i32>} : memref<2x8xf32, #tpu.memory_space<vmem>>, vector<2x8xf32>,
    return
  }
  func.func @transform_0(%arg0: i32) -> (i32, i32) {
    %c0_i32 = arith.constant 0 : i32
    %c0_i32_0 = arith.constant 0 : i32
    return %arg0, %c0_i32 : i32, i32
  }
  func.func @transform_1(%arg0: i32) -> (i32, i32, i32) {
    %c0_i32 = arith.constant 0 : i32
    %c0_i32_0 = arith.constant 0 : i32
    %c0_i32_1 = arith.constant 0 : i32
    return %arg0, %c0_i32, %c0_i32_0 : i32, i32, i32
  }
  func.func @transform_2(%arg0: i32) -> (i32, i32) {
    %c0_i32 = arith.constant 0 : i32
    %c0_i32_0 = arith.constant 0 : i32
    %c0_i32_1 = arith.constant 0 : i32
    return %c0_i32, %c0_i32_0 : i32, i32
  }
  func.func @transform_3(%arg0: i32) -> (i32, i32) {
    %c0_i32 = arith.constant 0 : i32
    %c0_i32_0 = arith.constant 0 : i32
    %c0_i32_1 = arith.constant 0 : i32
    return %c0_i32, %c0_i32_0 : i32, i32
  }
  func.func @transform_4(%arg0: i32) -> (i32, i32) {
    %c0_i32 = arith.constant 0 : i32
    %c0_i32_0 = arith.constant 0 : i32
    %c0_i32_1 = arith.constant 0 : i32
    return %c0_i32, %c0_i32_0 : i32, i32
  }
  func.func @transform_5(%arg0: i32) -> (i32, i32) {
    %c0_i32 = arith.constant 0 : i32
    %c0_i32_0 = arith.constant 0 : i32
    %c0_i32_1 = arith.constant 0 : i32
    return %c0_i32, %c0_i32_0 : i32, i32
  }
  func.func @transform_6(%arg0: i32) -> (i32, i32) {
    %c0_i32 = arith.constant 0 : i32
    %c0_i32_0 = arith.constant 0 : i32
    return %arg0, %c0_i32 : i32, i32
  }
  func.func @transform_7(%arg0: i32) -> (i32, i32) {
    %c0_i32 = arith.constant 0 : i32
    %c0_i32_0 = arith.constant 0 : i32
    return %arg0, %c0_i32 : i32, i32
  }
}

</mosaic_0001>

<llo_original>
// kernel: tpu_custom_call.1
$region0: #{tpu_custom_call.1}
  #allocation0 [shape = 'u32[]', space=smem, size = 0x4, offset = 0x4, fixed_abs, tag = 'smem constant byte address 0x4 - core index']
  #allocation1 [shape = 'u32[72,128]{1,0:T(1,128)}', space=vmem, size = 0x9000, scoped, tag = 'internal scratch']
  %s0 = inlined_call_operand.hbm [shape: f32[2,32], index: 0, kind: input, shape index: {}]
  %s1 = inlined_call_operand.hbm [shape: f32[2,8,32], index: 1, kind: input, shape index: {}]
  %s2 = inlined_call_operand.hbm [shape: f32[32,32], index: 2, kind: input, shape index: {}]
  %s3 = inlined_call_operand.vmem [shape: f32[1,32], index: 3, kind: input, shape index: {}]
  %s4 = inlined_call_operand.hbm [shape: f32[32,32], index: 4, kind: input, shape index: {}]
  %s5 = inlined_call_operand.vmem [shape: f32[1,32], index: 5, kind: input, shape index: {}]
  %s6 = inlined_call_operand.hbm [shape: f32[2,32], index: 6, kind: output, shape index: {0}]
  %s7 = inlined_call_operand.hbm [shape: f32[2,8], index: 7, kind: output, shape index: {1}]
  %8 = xla_tuple %s6, %s7
  %s9 = sld [smem:[#allocation0]]
  $region58: #{tpu_custom_call.1} parent=0
    _
  %s11 = ssub.s32 1, %s9
  %s12 = scalar_select 0, %s11, %s9
  $region1: #{tpu_custom_call.1} parent=0
    #allocation2 [shape = 'u8[1024]{0}', space=vmem, size = 0x400, scoped, tag = 'input window, operand 0, single buffered']
    #allocation3 [shape = 's32[1]{0}', space=sflag, size = 0x4, scoped, tag = 'scoped memory for tpu_custom_call.1']
    #allocation4 [shape = 's32[1]{0}', space=sflag, size = 0x4, scoped, tag = 'scoped memory for tpu_custom_call.1']
    #allocation5 [shape = 'u8[8192]{0}', space=vmem, size = 0x2000, scoped, tag = 'input window, operand 1, single buffered']
    #allocation6 [shape = 's32[1]{0}', space=sflag, size = 0x4, scoped, tag = 'scoped memory for tpu_custom_call.1']
    #allocation7 [shape = 'u8[16384]{0}', space=vmem, size = 0x4000, scoped, tag = 'input window, operand 2, single buffered']
    #allocation8 [shape = 'u8[16384]{0}', space=vmem, size = 0x4000, scoped, tag = 'input window, operand 4, single buffered']
    #allocation9 [shape = 's32[1]{0}', space=sflag, size = 0x4, scoped, tag = 'scoped memory for tpu_custom_call.1']
    #allocation10 [shape = 'u8[1024]{0}', space=vmem, size = 0x400, scoped, tag = 'output window, operand 0, single buffered']
    #allocation11 [shape = 'u8[1024]{0}', space=vmem, size = 0x400, scoped, tag = 'output window, operand 1, single buffered']
    #allocation12 [shape = 's32[1]{0}', space=sflag, size = 0x4, scoped, tag = 'scoped memory for tpu_custom_call.1']
    %13 = vsyncpa [#allocation3], 0
    %14 = vsyncpa [#allocation6], 0
    %15 = vsyncpa [#allocation9], 0
    %16 = vsyncpa [#allocation4], 0
    %17 = vsyncpa [#allocation12], 0
    // Predicated region
    $region2: #{tpu_custom_call.1} parent=1 // pred_check
      _
    $region3: #{tpu_custom_call.1} parent=1 // pred_check_branch
      %19 = sbr.rel (0) target = $region5
    $region4: #{tpu_custom_call.1} parent=1 // pred_region
      %21 = vsyncadd [#allocation3], 0
      %s23 = sshll.u32 %s0, 4
      %s24 = int_to_ptr.hbm [resolvable:$true] %s23
      %s25 = sshll.u32 [#allocation2], 4
      %s26 = int_to_ptr.vmem [resolvable:$true] %s25
      %28 = dma.hbm_to_vmem [thread:$0]  %s24, 32, %s26, [#allocation3]
    $region5: #{tpu_custom_call.1} parent=1 // pred_fallthru
      _
    // Predicated region
    $region6: #{tpu_custom_call.1} parent=1 // pred_check
      _
    $region7: #{tpu_custom_call.1} parent=1 // pred_check_branch
      %30 = sbr.rel (0) target = $region9
    $region8: #{tpu_custom_call.1} parent=1 // pred_region
      %32 = vsyncadd [#allocation6], 0
      %s33 = sshll.u32 %s1, 4
      %s34 = int_to_ptr.hbm [resolvable:$true] %s33
      %s35 = sshll.u32 [#allocation5], 4
      %s36 = int_to_ptr.vmem [resolvable:$true] %s35
      %41 = dma.hbm_to_vmem [thread:$0]  %s34, 256, %s36, [#allocation6], 128, 128, 8
    $region9: #{tpu_custom_call.1} parent=1 // pred_fallthru
      _
    // Predicated region
    $region10: #{tpu_custom_call.1} parent=1 // pred_check
      _
    $region11: #{tpu_custom_call.1} parent=1 // pred_check_branch
      %43 = sbr.rel (0) target = $region13
    $region12: #{tpu_custom_call.1} parent=1 // pred_region
      %45 = vsyncadd [#allocation6], 0
      %s46 = sshll.u32 %s2, 4
      %s47 = int_to_ptr.hbm [resolvable:$true] %s46
      %s48 = sshll.u32 [#allocation7], 4
      %s49 = int_to_ptr.vmem [resolvable:$true] %s48
      %54 = dma.hbm_to_vmem [thread:$0]  %s47, 512, %s49, [#allocation6], 128, 128, 8
    $region13: #{tpu_custom_call.1} parent=1 // pred_fallthru
      _
    // Predicated region
    $region14: #{tpu_custom_call.1} parent=1 // pred_check
      _
    $region15: #{tpu_custom_call.1} parent=1 // pred_check_branch
      %56 = sbr.rel (0) target = $region17
    $region16: #{tpu_custom_call.1} parent=1 // pred_region
      _
    $region17: #{tpu_custom_call.1} parent=1 // pred_fallthru
      _
    // Predicated region
    $region18: #{tpu_custom_call.1} parent=1 // pred_check
      _
    $region19: #{tpu_custom_call.1} parent=1 // pred_check_branch
      %58 = sbr.rel (0) target = $region21
    $region20: #{tpu_custom_call.1} parent=1 // pred_region
      %60 = vsyncadd [#allocation9], 0
      %s61 = sshll.u32 %s4, 4
      %s62 = int_to_ptr.hbm [resolvable:$true] %s61
      %s63 = sshll.u32 [#allocation8], 4
      %s64 = int_to_ptr.vmem [resolvable:$true] %s63
      %69 = dma.hbm_to_vmem [thread:$0]  %s62, 512, %s64, [#allocation9], 128, 128, 8
    $region21: #{tpu_custom_call.1} parent=1 // pred_fallthru
      _
    // Predicated region
    $region22: #{tpu_custom_call.1} parent=1 // pred_check
      _
    $region23: #{tpu_custom_call.1} parent=1 // pred_check_branch
      %71 = sbr.rel (0) target = $region25
    $region24: #{tpu_custom_call.1} parent=1 // pred_region
      _
    $region25: #{tpu_custom_call.1} parent=1 // pred_fallthru
      _
    // Predicated region
    $region26: #{tpu_custom_call.1} parent=1 // pred_check
      _
    $region27: #{tpu_custom_call.1} parent=1 // pred_check_branch
      %73 = sbr.rel (0) target = $region29
    $region28: #{tpu_custom_call.1} parent=1 // pred_region
      %75 = dma.done [#allocation3], 32
    $region29: #{tpu_custom_call.1} parent=1 // pred_fallthru
      _
    // Predicated region
    $region30: #{tpu_custom_call.1} parent=1 // pred_check
      _
    $region31: #{tpu_custom_call.1} parent=1 // pred_check_branch
      %77 = sbr.rel (0) target = $region33
    $region32: #{tpu_custom_call.1} parent=1 // pred_region
      %79 = dma.done [#allocation6], 256
    $region33: #{tpu_custom_call.1} parent=1 // pred_fallthru
      _
    // Predicated region
    $region34: #{tpu_custom_call.1} parent=1 // pred_check
      _
    $region35: #{tpu_custom_call.1} parent=1 // pred_check_branch
      %81 = sbr.rel (0) target = $region37
    $region36: #{tpu_custom_call.1} parent=1 // pred_region
      %83 = dma.done [#allocation6], 512
    $region37: #{tpu_custom_call.1} parent=1 // pred_fallthru
      _
    // Predicated region
    $region38: #{tpu_custom_call.1} parent=1 // pred_check
      _
    $region39: #{tpu_custom_call.1} parent=1 // pred_check_branch
      %85 = sbr.rel (0) target = $region41
    $region40: #{tpu_custom_call.1} parent=1 // pred_region
      %87 = dma.done [#allocation9], 512
    $region41: #{tpu_custom_call.1} parent=1 // pred_fallthru
      _
    %v88 = vld [vmem:[#allocation2] sm:$0x3]
    %v89 = vld [vmem:[#allocation5] sm:$0xff]
    %v90 = vld [vmem:[#allocation5 + $0x8] sm:$0xff]
    %v91 = vld [vmem:[#allocation7] sm:$0xff]
    %v92 = vld [vmem:[#allocation7 + $0x8] sm:$0xff]
    %v93 = vld [vmem:[#allocation7 + $0x10] sm:$0xff]
    %v94 = vld [vmem:[#allocation7 + $0x18] sm:$0xff]
    %v95 = vld [vmem:[%s3] sm:$0x1]
    %v97 = vperm.slane %v95, 0
    %vm99 = vcmask 261120
    %v101 = vsel %vm99, %v88, 0
    %103 = vmatpush.msra.mxu0 0.0
    %104 = vmatpush.msra.mxu0 0.0
    %105 = vmatpush.msra.mxu0 0.0
    %106 = vmatpush.msra.mxu0 0.0
    %107 = vmatpush.msra.mxu0 0.0
    %108 = vmatpush.msra.mxu0 0.0
    %109 = vmatpush.msra.mxu0 0.0
    %110 = vmatpush.msra.mxu0 0.0
    %111 = vmatpush.msra.mxu0 0.0
    %112 = vmatpush.msra.mxu0 0.0
    %113 = vmatpush.msra.mxu0 0.0
    %114 = vmatpush.msra.mxu0 0.0
    %115 = vmatpush.msra.mxu0 %v94
    %116 = vmatpush.msra.mxu0 %v93
    %117 = vmatpush.msra.mxu0 %v92
    %118 = vmatpush.msra.mxu0 %v91
    %119 = vmatmul.f32.gmra.mxu0 %v101
    %v120 = vpop.f32.mrf.mxu0
    %v121 = vadd.f32 %v97, %v120
    %122 = vdwg.mxu0
    %v123 = vld [vmem:[#allocation8] sm:$0xff]
    %v124 = vld [vmem:[#allocation8 + $0x8] sm:$0xff]
    %v125 = vld [vmem:[#allocation8 + $0x10] sm:$0xff]
    %v126 = vld [vmem:[#allocation8 + $0x18] sm:$0xff]
    %v128 = vsel %vm99, %v89, 0
    %v131 = vsel %vm99, %v90, 0
    %133 = vmatpush.msra.mxu0 0.0
    %134 = vmatpush.msra.mxu0 0.0
    %135 = vmatpush.msra.mxu0 0.0
    %136 = vmatpush.msra.mxu0 0.0
    %137 = vmatpush.msra.mxu0 0.0
    %138 = vmatpush.msra.mxu0 0.0
    %139 = vmatpush.msra.mxu0 0.0
    %140 = vmatpush.msra.mxu0 0.0
    %141 = vmatpush.msra.mxu0 0.0
    %142 = vmatpush.msra.mxu0 0.0
    %143 = vmatpush.msra.mxu0 0.0
    %144 = vmatpush.msra.mxu0 0.0
    %145 = vmatpush.msra.mxu0 %v126
    %146 = vmatpush.msra.mxu0 %v125
    %147 = vmatpush.msra.mxu0 %v124
    %148 = vmatpush.msra.mxu0 %v123
    %149 = vmatmul.f32.gmra.mxu0 %v128
    %v150 = vpop.f32.mrf.mxu0
    %v151 = vadd.f32 0.0, %v150
    %152 = vmatmul.f32.gmra.mxu0 %v131
    %v153 = vpop.f32.mrf.mxu0
    %v154 = vadd.f32 0.0, %v153
    %155 = vdwg.mxu0
    %v157 = vrot.slane %v121, 1
    %v158 = vperm.slane %v121, 0
    %v159 = vperm.slane %v157, 0
    %v162 = vadd.f32 %v151, %v158
    %v163 = vadd.f32 %v154, %v159
    %v164 = vtanh.pop %v162
    %v165 = vtanh.pop %v163
    %v166 = vld [vmem:[%s5] sm:$0x1]
    %v168 = vperm.slane %v166, 0
    %v170 = vmul.f32 %v164, %v168
    %v171 = vmul.f32 %v165, %v168
    %v172 = vsel %vm99, %v170, 0.0
    %173 = vadd.xlane.f32.xlu0 %v172
    %v174 = vpop.xlane.xlu0 %173
    %v175 = vsel %vm99, %v171, 0.0
    %176 = vadd.xlane.f32.xlu0 %v175
    %v177 = vpop.xlane.xlu0 %176
    %v180 = vlaneseq
    %v181 = vand.u32 %v180, 127
    %v182 = vperm.slane %v174, %v181
    %v183 = vperm.slane %v177, %v181
    %vm184 = vcmask 1041409
    %v185 = vsel %vm184, %v183, %v182
    %vm187 = vcmask 58368
    %v188 = vsel %vm187, %v185, -inf
    %189 = vmax.xlane.f32.xlu0 %v188
    %v190 = vpop.xlane.xlu0 %189
    %v192 = vperm.slane %v190, 0
    %v193 = vperm.slane %v190, 1
    %v196 = vsub.f32 %v174, %v192
    %v197 = vsub.f32 %v177, %v193
    %v198 = vmul.f32 %v196, 1.442695
    %v199 = vpow.pop %v198
    %v200 = vmul.f32 %v197, 1.442695
    %v201 = vpow.pop %v200
    %204 = vset.pattern.permute.xlu0 0
    %205 = vperm.xlu0 %204, %v199
    %v206 = vpop.permute.xlu0 %205
    %207 = vset.pattern.permute.xlu0 0
    %208 = vperm.xlu0 %207, %v201
    %v209 = vpop.permute.xlu0 %208
    %v210 = vperm.slane %v206, %v181
    %v211 = vperm.slane %v209, %v181
    %v212 = vsel %vm184, %v211, %v210
    %v214 = vsel %vm187, %v212, 0.0
    %215 = vadd.xlane.f32.xlu0 %v214
    %v216 = vpop.xlane.xlu0 %215
    %v218 = vperm.slane %v216, 0
    %v219 = vperm.slane %v216, 1
    %v222 = vrcp.pop %v218
    %v223 = vmul.f32 %v218, %v222
    %v224 = vsub.f32 1.0, %v223
    %v225 = vmul.f32 %v222, %v224
    %v226 = vadd.f32 %v222, %v225
    %vm227 = vweird.f32 %v218
    %vm228 = vweird.f32 %v222
    %vm229 = vmor %vm227, %vm228
    %v230 = vsel %vm229, %v222, %v226
    %v231 = vand.u32 2147483647, %v218
    %vm232 = vcmp.eq.f32.partialorder %v231, 8.507059e+37
    %v233 = vand.u32 %v218, 2147483648
    %v234 = vor.u32 1.1754944e-38, %v233
    %v235 = vsel %vm232, %v234, %v230
    %v236 = vmul.f32 %v199, %v235
    %v237 = vrcp.pop %v219
    %v238 = vmul.f32 %v219, %v237
    %v239 = vsub.f32 1.0, %v238
    %v240 = vmul.f32 %v237, %v239
    %v241 = vadd.f32 %v237, %v240
    %vm242 = vweird.f32 %v219
    %vm243 = vweird.f32 %v237
    %vm244 = vmor %vm242, %vm243
    %v245 = vsel %vm244, %v237, %v241
    %v246 = vand.u32 2147483647, %v219
    %vm247 = vcmp.eq.f32.partialorder %v246, 8.507059e+37
    %v248 = vand.u32 %v219, 2147483648
    %v249 = vor.u32 1.1754944e-38, %v248
    %v250 = vsel %vm247, %v249, %v245
    %v251 = vmul.f32 %v201, %v250
    %253 = vset.pattern.permute.xlu0 0
    %254 = vperm.xlu0 %253, %v236
    %v255 = vpop.permute.xlu0 %254
    %v256 = vperm.slane %v255, %v181
    %vm257 = vcmask 64512
    %v258 = vsel %vm257, %v256, 0
    %260 = vmatpush.msra.mxu0 0.0
    %261 = vmatpush.msra.mxu0 0.0
    %262 = vmatpush.msra.mxu0 0.0
    %263 = vmatpush.msra.mxu0 0.0
    %264 = vmatpush.msra.mxu0 0.0
    %265 = vmatpush.msra.mxu0 0.0
    %266 = vmatpush.msra.mxu0 0.0
    %267 = vmatpush.msra.mxu0 0.0
    %268 = vmatpush.msra.mxu0 0.0
    %269 = vmatpush.msra.mxu0 0.0
    %270 = vmatpush.msra.mxu0 0.0
    %271 = vmatpush.msra.mxu0 0.0
    %272 = vmatpush.msra.mxu0 0.0
    %273 = vmatpush.msra.mxu0 0.0
    %274 = vmatpush.msra.mxu0 0.0
    %275 = vmatpush.msra.mxu0 %v89
    %276 = vmatmul.f32.gmra.mxu0 %v258
    %v277 = vpop.f32.mrf.mxu0
    %v278 = vadd.f32 0.0, %v277
    %279 = vdwg.mxu0
    %281 = vset.pattern.permute.xlu0 0
    %282 = vperm.xlu0 %281, %v251
    %v283 = vpop.permute.xlu0 %282
    %v284 = vperm.slane %v283, %v181
    %v285 = vsel %vm257, %v284, 0
    %287 = vmatpush.msra.mxu0 0.0
    %288 = vmatpush.msra.mxu0 0.0
    %289 = vmatpush.msra.mxu0 0.0
    %290 = vmatpush.msra.mxu0 0.0
    %291 = vmatpush.msra.mxu0 0.0
    %292 = vmatpush.msra.mxu0 0.0
    %293 = vmatpush.msra.mxu0 0.0
    %294 = vmatpush.msra.mxu0 0.0
    %295 = vmatpush.msra.mxu0 0.0
    %296 = vmatpush.msra.mxu0 0.0
    %297 = vmatpush.msra.mxu0 0.0
    %298 = vmatpush.msra.mxu0 0.0
    %299 = vmatpush.msra.mxu0 0.0
    %300 = vmatpush.msra.mxu0 0.0
    %301 = vmatpush.msra.mxu0 0.0
    %302 = vmatpush.msra.mxu0 %v90
    %303 = vmatmul.f32.gmra.mxu0 %v285
    %v304 = vpop.f32.mrf.mxu0
    %v305 = vadd.f32 0.0, %v304
    %306 = vdwg.mxu0
    %v309 = vrot.slane %v305, 7
    %v310 = vsel %vm184, %v309, %v278
    %vm312 = vcmask 254976
    %313 = vst.msk [vmem:[#allocation10] sm:$0x3] %vm312, %v310
    %v314 = vsel %vm184, %v284, %v256
    %316 = vst.msk [vmem:[#allocation11] sm:$0x3] %vm187, %v314
    // Predicated region
    $region42: #{tpu_custom_call.1} parent=1 // pred_check
      _
    $region43: #{tpu_custom_call.1} parent=1 // pred_check_branch
      %318 = sbr.rel (0) target = $region45
    $region44: #{tpu_custom_call.1} parent=1 // pred_region
      %320 = vsyncadd [#allocation4], 0
      %s322 = sshll.u32 [#allocation10], 4
      %s323 = int_to_ptr.vmem [resolvable:$true] %s322
      %s324 = sshll.u32 %s6, 4
      %s325 = int_to_ptr.hbm [resolvable:$true] %s324
      %327 = dma.vmem_to_hbm [thread:$0]  %s323, 32, %s325, [#allocation4]
    $region45: #{tpu_custom_call.1} parent=1 // pred_fallthru
      _
    // Predicated region
    $region46: #{tpu_custom_call.1} parent=1 // pred_check
      _
    $region47: #{tpu_custom_call.1} parent=1 // pred_check_branch
      %329 = sbr.rel (0) target = $region49
    $region48: #{tpu_custom_call.1} parent=1 // pred_region
      %331 = vsyncadd [#allocation12], 0
      %s333 = sshll.u32 [#allocation11], 4
      %s334 = int_to_ptr.vmem [resolvable:$true] %s333
      %s335 = sshll.u32 %s7, 4
      %s336 = int_to_ptr.hbm [resolvable:$true] %s335
      %338 = dma.vmem_to_hbm [thread:$0]  %s334, 32, %s336, [#allocation12]
    $region49: #{tpu_custom_call.1} parent=1 // pred_fallthru
      _
    // Predicated region
    $region50: #{tpu_custom_call.1} parent=1 // pred_check
      _
    $region51: #{tpu_custom_call.1} parent=1 // pred_check_branch
      %340 = sbr.rel (0) target = $region53
    $region52: #{tpu_custom_call.1} parent=1 // pred_region
      %342 = dma.done [#allocation4], 32
    $region53: #{tpu_custom_call.1} parent=1 // pred_fallthru
      _
    // Predicated region
    $region54: #{tpu_custom_call.1} parent=1 // pred_check
      _
    $region55: #{tpu_custom_call.1} parent=1 // pred_check_branch
      %344 = sbr.rel (0) target = $region57
    $region56: #{tpu_custom_call.1} parent=1 // pred_region
      %346 = dma.done [#allocation12], 32
    $region57: #{tpu_custom_call.1} parent=1 // pred_fallthru
      _
    %347 = vsyncpa [#allocation3], 1
    %348 = vsyncpa [#allocation6], 1
    %349 = vsyncpa [#allocation9], 1
    %350 = vsyncpa [#allocation4], 1
    %351 = vsyncpa [#allocation12], 1

// kernel: tpu_custom_call.1
$region0: #{tpu_custom_call.1}
  #allocation0 [shape = 'u32[]', space=smem, size = 0x4, offset = 0x4, fixed_abs, tag = 'smem constant byte address 0x4 - core index']
  #allocation1 [shape = 'u32[72,128]{1,0:T(1,128)}', space=vmem, size = 0x9000, scoped, tag = 'internal scratch']
  %s0 = inlined_call_operand.hbm [shape: f32[2,32], index: 0, kind: input, shape index: {}]
  %s1 = inlined_call_operand.hbm [shape: f32[2,8,32], index: 1, kind: input, shape index: {}]
  %s2 = inlined_call_operand.hbm [shape: f32[32,32], index: 2, kind: input, shape index: {}]
  %s3 = inlined_call_operand.vmem [shape: f32[1,32], index: 3, kind: input, shape index: {}]
  %s4 = inlined_call_operand.hbm [shape: f32[32,32], index: 4, kind: input, shape index: {}]
  %s5 = inlined_call_operand.vmem [shape: f32[1,32], index: 5, kind: input, shape index: {}]
  %s6 = inlined_call_operand.hbm [shape: f32[2,32], index: 6, kind: output, shape index: {0}]
  %s7 = inlined_call_operand.hbm [shape: f32[2,8], index: 7, kind: output, shape index: {1}]
  %8 = xla_tuple %s6, %s7
  %s9 = sld [smem:[#allocation0]]
  $region58: #{tpu_custom_call.1} parent=0
    _
  %s11 = ssub.s32 1, %s9
  %s12 = scalar_select 0, %s11, %s9
  $region1: #{tpu_custom_call.1} parent=0
    #allocation2 [shape = 'u8[1024]{0}', space=vmem, size = 0x400, scoped, tag = 'input window, operand 0, single buffered']
    #allocation3 [shape = 's32[1]{0}', space=sflag, size = 0x4, scoped, tag = 'scoped memory for tpu_custom_call.1']
    #allocation4 [shape = 's32[1]{0}', space=sflag, size = 0x4, scoped, tag = 'scoped memory for tpu_custom_call.1']
    #allocation5 [shape = 'u8[8192]{0}', space=vmem, size = 0x2000, scoped, tag = 'input window, operand 1, single buffered']
    #allocation6 [shape = 's32[1]{0}', space=sflag, size = 0x4, scoped, tag = 'scoped memory for tpu_custom_call.1']
    #allocation7 [shape = 'u8[16384]{0}', space=vmem, size = 0x4000, scoped, tag = 'input window, operand 2, single buffered']
    #allocation8 [shape = 'u8[16384]{0}', space=vmem, size = 0x4000, scoped, tag = 'input window, operand 4, single buffered']
    #allocation9 [shape = 's32[1]{0}', space=sflag, size = 0x4, scoped, tag = 'scoped memory for tpu_custom_call.1']
    #allocation10 [shape = 'u8[1024]{0}', space=vmem, size = 0x400, scoped, tag = 'output window, operand 0, single buffered']
    #allocation11 [shape = 'u8[1024]{0}', space=vmem, size = 0x400, scoped, tag = 'output window, operand 1, single buffered']
    #allocation12 [shape = 's32[1]{0}', space=sflag, size = 0x4, scoped, tag = 'scoped memory for tpu_custom_call.1']
    %13 = vsyncpa [#allocation3], 0
    %14 = vsyncpa [#allocation6], 0
    %15 = vsyncpa [#allocation9], 0
    %16 = vsyncpa [#allocation4], 0
    %17 = vsyncpa [#allocation12], 0
    // Predicated region
    $region2: #{tpu_custom_call.1} parent=1 // pred_check
      _
    $region3: #{tpu_custom_call.1} parent=1 // pred_check_branch
      %19 = sbr.rel (0) target = $region5
    $region4: #{tpu_custom_call.1} parent=1 // pred_region
      %21 = vsyncadd [#allocation3], 0
      %s23 = sshll.u32 %s0, 4
      %s24 = int_to_ptr.hbm [resolvable:$true] %s23
      %s25 = sshll.u32 [#allocation2], 4
      %s26 = int_to_ptr.vmem [resolvable:$true] %s25
      %28 = dma.hbm_to_vmem [thread:$0]  %s24, 32, %s26, [#allocation3]
    $region5: #{tpu_custom_call.1} parent=1 // pred_fallthru
      _
    // Predicated region
    $region6: #{tpu_custom_call.1} parent=1 // pred_check
      _
    $region7: #{tpu_custom_call.1} parent=1 // pred_check_branch
      %30 = sbr.rel (0) target = $region9
    $region8: #{tpu_custom_call.1} parent=1 // pred_region
      %32 = vsyncadd [#allocation6], 0
      %s33 = sshll.u32 %s1, 4
      %s34 = int_to_ptr.hbm [resolvable:$true] %s33
      %s35 = sshll.u32 [#allocation5], 4
      %s36 = int_to_ptr.vmem [resolvable:$true] %s35
      %41 = dma.hbm_to_vmem [thread:$0]  %s34, 256, %s36, [#allocation6], 128, 128, 8
    $region9: #{tpu_custom_call.1} parent=1 // pred_fallthru
      _
    // Predicated region
    $region10: #{tpu_custom_call.1} parent=1 // pred_check
      _
    $region11: #{tpu_custom_call.1} parent=1 // pred_check_branch
      %43 = sbr.rel (0) target = $region13
    $region12: #{tpu_custom_call.1} parent=1 // pred_region
      %45 = vsyncadd [#allocation6], 0
      %s46 = sshll.u32 %s2, 4
      %s47 = int_to_ptr.hbm [resolvable:$true] %s46
      %s48 = sshll.u32 [#allocation7], 4
      %s49 = int_to_ptr.vmem [resolvable:$true] %s48
      %54 = dma.hbm_to_vmem [thread:$0]  %s47, 512, %s49, [#allocation6], 128, 128, 8
    $region13: #{tpu_custom_call.1} parent=1 // pred_fallthru
      _
    // Predicated region
    $region14: #{tpu_custom_call.1} parent=1 // pred_check
      _
    $region15: #{tpu_custom_call.1} parent=1 // pred_check_branch
      %56 = sbr.rel (0) target = $region17
    $region16: #{tpu_custom_call.1} parent=1 // pred_region
      _
    $region17: #{tpu_custom_call.1} parent=1 // pred_fallthru
      _
    // Predicated region
    $region18: #{tpu_custom_call.1} parent=1 // pred_check
      _
    $region19: #{tpu_custom_call.1} parent=1 // pred_check_branch
      %58 = sbr.rel (0) target = $region21
    $region20: #{tpu_custom_call.1} parent=1 // pred_region
      %60 = vsyncadd [#allocation9], 0
      %s61 = sshll.u32 %s4, 4
      %s62 = int_to_ptr.hbm [resolvable:$true] %s61
      %s63 = sshll.u32 [#allocation8], 4
      %s64 = int_to_ptr.vmem [resolvable:$true] %s63
      %69 = dma.hbm_to_vmem [thread:$0]  %s62, 512, %s64, [#allocation9], 128, 128, 8
    $region21: #{tpu_custom_call.1} parent=1 // pred_fallthru
      _
    // Predicated region
    $region22: #{tpu_custom_call.1} parent=1 // pred_check
      _
    $region23: #{tpu_custom_call.1} parent=1 // pred_check_branch
      %71 = sbr.rel (0) target = $region25
    $region24: #{tpu_custom_call.1} parent=1 // pred_region
      _
    $region25: #{tpu_custom_call.1} parent=1 // pred_fallthru
      _
    // Predicated region
    $region26: #{tpu_custom_call.1} parent=1 // pred_check
      _
    $region27: #{tpu_custom_call.1} parent=1 // pred_check_branch
      %73 = sbr.rel (0) target = $region29
    $region28: #{tpu_custom_call.1} parent=1 // pred_region
      %75 = dma.done [#allocation3], 32
    $region29: #{tpu_custom_call.1} parent=1 // pred_fallthru
      _
    // Predicated region
    $region30: #{tpu_custom_call.1} parent=1 // pred_check
      _
    $region31: #{tpu_custom_call.1} parent=1 // pred_check_branch
      %77 = sbr.rel (0) target = $region33
    $region32: #{tpu_custom_call.1} parent=1 // pred_region
      %79 = dma.done [#allocation6], 256
    $region33: #{tpu_custom_call.1} parent=1 // pred_fallthru
      _
    // Predicated region
    $region34: #{tpu_custom_call.1} parent=1 // pred_check
      _
    $region35: #{tpu_custom_call.1} parent=1 // pred_check_branch
      %81 = sbr.rel (0) target = $region37
    $region36: #{tpu_custom_call.1} parent=1 // pred_region
      %83 = dma.done [#allocation6], 512
    $region37: #{tpu_custom_call.1} parent=1 // pred_fallthru
      _
    // Predicated region
    $region38: #{tpu_custom_call.1} parent=1 // pred_check
      _
    $region39: #{tpu_custom_call.1} parent=1 // pred_check_branch
      %85 = sbr.rel (0) target = $region41
    $region40: #{tpu_custom_call.1} parent=1 // pred_region
      %87 = dma.done [#allocation9], 512
    $region41: #{tpu_custom_call.1} parent=1 // pred_fallthru
      _
    %v88 = vld [vmem:[#allocation2] sm:$0x3]
    %v89 = vld [vmem:[#allocation5] sm:$0xff]
    %v90 = vld [vmem:[#allocation5 + $0x8] sm:$0xff]
    %v91 = vld [vmem:[#allocation7] sm:$0xff]
    %v92 = vld [vmem:[#allocation7 + $0x8] sm:$0xff]
    %v93 = vld [vmem:[#allocation7 + $0x10] sm:$0xff]
    %v94 = vld [vmem:[#allocation7 + $0x18] sm:$0xff]
    %v95 = vld [vmem:[%s3] sm:$0x1]
    %v97 = vperm.slane %v95, 0
    %vm99 = vcmask 261120
    %v101 = vsel %vm99, %v88, 0
    %103 = vmatpush.msra.mxu0 0.0
    %104 = vmatpush.msra.mxu0 0.0
    %105 = vmatpush.msra.mxu0 0.0
    %106 = vmatpush.msra.mxu0 0.0
    %107 = vmatpush.msra.mxu0 0.0
    %108 = vmatpush.msra.mxu0 0.0
    %109 = vmatpush.msra.mxu0 0.0
    %110 = vmatpush.msra.mxu0 0.0
    %111 = vmatpush.msra.mxu0 0.0
    %112 = vmatpush.msra.mxu0 0.0
    %113 = vmatpush.msra.mxu0 0.0
    %114 = vmatpush.msra.mxu0 0.0
    %115 = vmatpush.msra.mxu0 %v94
    %116 = vmatpush.msra.mxu0 %v93
    %117 = vmatpush.msra.mxu0 %v92
    %118 = vmatpush.msra.mxu0 %v91
    %119 = vmatmul.f32.gmra.mxu0 %v101
    %v120 = vpop.f32.mrf.mxu0
    %v121 = vadd.f32 %v97, %v120
    %122 = vdwg.mxu0
    %v123 = vld [vmem:[#allocation8] sm:$0xff]
    %v124 = vld [vmem:[#allocation8 + $0x8] sm:$0xff]
    %v125 = vld [vmem:[#allocation8 + $0x10] sm:$0xff]
    %v126 = vld [vmem:[#allocation8 + $0x18] sm:$0xff]
    %v128 = vsel %vm99, %v89, 0
    %v131 = vsel %vm99, %v90, 0
    %133 = vmatpush.msra.mxu0 0.0
    %134 = vmatpush.msra.mxu0 0.0
    %135 = vmatpush.msra.mxu0 0.0
    %136 = vmatpush.msra.mxu0 0.0
    %137 = vmatpush.msra.mxu0 0.0
    %138 = vmatpush.msra.mxu0 0.0
    %139 = vmatpush.msra.mxu0 0.0
    %140 = vmatpush.msra.mxu0 0.0
    %141 = vmatpush.msra.mxu0 0.0
    %142 = vmatpush.msra.mxu0 0.0
    %143 = vmatpush.msra.mxu0 0.0
    %144 = vmatpush.msra.mxu0 0.0
    %145 = vmatpush.msra.mxu0 %v126
    %146 = vmatpush.msra.mxu0 %v125
    %147 = vmatpush.msra.mxu0 %v124
    %148 = vmatpush.msra.mxu0 %v123
    %149 = vmatmul.f32.gmra.mxu0 %v128
    %v150 = vpop.f32.mrf.mxu0
    %v151 = vadd.f32 0.0, %v150
    %152 = vmatmul.f32.gmra.mxu0 %v131
    %v153 = vpop.f32.mrf.mxu0
    %v154 = vadd.f32 0.0, %v153
    %155 = vdwg.mxu0
    %v157 = vrot.slane %v121, 1
    %v158 = vperm.slane %v121, 0
    %v159 = vperm.slane %v157, 0
    %v162 = vadd.f32 %v151, %v158
    %v163 = vadd.f32 %v154, %v159
    %v164 = vtanh.pop %v162
    %v165 = vtanh.pop %v163
    %v166 = vld [vmem:[%s5] sm:$0x1]
    %v168 = vperm.slane %v166, 0
    %v170 = vmul.f32 %v164, %v168
    %v171 = vmul.f32 %v165, %v168
    %v172 = vsel %vm99, %v170, 0.0
    %173 = vadd.xlane.f32.xlu0 %v172
    %v174 = vpop.xlane.xlu0 %173
    %v175 = vsel %vm99, %v171, 0.0
    %176 = vadd.xlane.f32.xlu0 %v175
    %v177 = vpop.xlane.xlu0 %176
    %v180 = vlaneseq
    %v181 = vand.u32 %v180, 127
    %v182 = vperm.slane %v174, %v181
    %v183 = vperm.slane %v177, %v181
    %vm184 = vcmask 1041409
    %v185 = vsel %vm184, %v183, %v182
    %vm187 = vcmask 58368
    %v188 = vsel %vm187, %v185, -inf
    %189 = vmax.xlane.f32.xlu0 %v188
    %v190 = vpop.xlane.xlu0 %189
    %v192 = vperm.slane %v190, 0
    %v193 = vperm.slane %v190, 1
    %v196 = vsub.f32 %v174, %v192
    %v197 = vsub.f32 %v177, %v193
    %v198 = vmul.f32 %v196, 1.442695
    %v199 = vpow.pop %v198
    %v200 = vmul.f32 %v197, 1.442695
    %v201 = vpow.pop %v200
    %204 = vset.pattern.permute.xlu0 0
    %205 = vperm.xlu0 %204, %v199
    %v206 = vpop.permute.xlu0 %205
    %207 = vset.pattern.permute.xlu0 0
    %208 = vperm.xlu0 %207, %v201
    %v209 = vpop.permute.xlu0 %208
    %v210 = vperm.slane %v206, %v181
    %v211 = vperm.slane %v209, %v181
    %v212 = vsel %vm184, %v211, %v210
    %v214 = vsel %vm187, %v212, 0.0
    %215 = vadd.xlane.f32.xlu0 %v214
    %v216 = vpop.xlane.xlu0 %215
    %v218 = vperm.slane %v216, 0
    %v219 = vperm.slane %v216, 1
    %v222 = vrcp.pop %v218
    %v223 = vmul.f32 %v218, %v222
    %v224 = vsub.f32 1.0, %v223
    %v225 = vmul.f32 %v222, %v224
    %v226 = vadd.f32 %v222, %v225
    %vm227 = vweird.f32 %v218
    %vm228 = vweird.f32 %v222
    %vm229 = vmor %vm227, %vm228
    %v230 = vsel %vm229, %v222, %v226
    %v231 = vand.u32 2147483647, %v218
    %vm232 = vcmp.eq.f32.partialorder %v231, 8.507059e+37
    %v233 = vand.u32 %v218, 2147483648
    %v234 = vor.u32 1.1754944e-38, %v233
    %v235 = vsel %vm232, %v234, %v230
    %v236 = vmul.f32 %v199, %v235
    %v237 = vrcp.pop %v219
    %v238 = vmul.f32 %v219, %v237
    %v239 = vsub.f32 1.0, %v238
    %v240 = vmul.f32 %v237, %v239
    %v241 = vadd.f32 %v237, %v240
    %vm242 = vweird.f32 %v219
    %vm243 = vweird.f32 %v237
    %vm244 = vmor %vm242, %vm243
    %v245 = vsel %vm244, %v237, %v241
    %v246 = vand.u32 2147483647, %v219
    %vm247 = vcmp.eq.f32.partialorder %v246, 8.507059e+37
    %v248 = vand.u32 %v219, 2147483648
    %v249 = vor.u32 1.1754944e-38, %v248
    %v250 = vsel %vm247, %v249, %v245
    %v251 = vmul.f32 %v201, %v250
    %253 = vset.pattern.permute.xlu0 0
    %254 = vperm.xlu0 %253, %v236
    %v255 = vpop.permute.xlu0 %254
    %v256 = vperm.slane %v255, %v181
    %vm257 = vcmask 64512
    %v258 = vsel %vm257, %v256, 0
    %260 = vmatpush.msra.mxu0 0.0
    %261 = vmatpush.msra.mxu0 0.0
    %262 = vmatpush.msra.mxu0 0.0
    %263 = vmatpush.msra.mxu0 0.0
    %264 = vmatpush.msra.mxu0 0.0
    %265 = vmatpush.msra.mxu0 0.0
    %266 = vmatpush.msra.mxu0 0.0
    %267 = vmatpush.msra.mxu0 0.0
    %268 = vmatpush.msra.mxu0 0.0
    %269 = vmatpush.msra.mxu0 0.0
    %270 = vmatpush.msra.mxu0 0.0
    %271 = vmatpush.msra.mxu0 0.0
    %272 = vmatpush.msra.mxu0 0.0
    %273 = vmatpush.msra.mxu0 0.0
    %274 = vmatpush.msra.mxu0 0.0
    %275 = vmatpush.msra.mxu0 %v89
    %276 = vmatmul.f32.gmra.mxu0 %v258
    %v277 = vpop.f32.mrf.mxu0
    %v278 = vadd.f32 0.0, %v277
    %279 = vdwg.mxu0
    %281 = vset.pattern.permute.xlu0 0
    %282 = vperm.xlu0 %281, %v251
    %v283 = vpop.permute.xlu0 %282
    %v284 = vperm.slane %v283, %v181
    %v285 = vsel %vm257, %v284, 0
    %287 = vmatpush.msra.mxu0 0.0
    %288 = vmatpush.msra.mxu0 0.0
    %289 = vmatpush.msra.mxu0 0.0
    %290 = vmatpush.msra.mxu0 0.0
    %291 = vmatpush.msra.mxu0 0.0
    %292 = vmatpush.msra.mxu0 0.0
    %293 = vmatpush.msra.mxu0 0.0
    %294 = vmatpush.msra.mxu0 0.0
    %295 = vmatpush.msra.mxu0 0.0
    %296 = vmatpush.msra.mxu0 0.0
    %297 = vmatpush.msra.mxu0 0.0
    %298 = vmatpush.msra.mxu0 0.0
    %299 = vmatpush.msra.mxu0 0.0
    %300 = vmatpush.msra.mxu0 0.0
    %301 = vmatpush.msra.mxu0 0.0
    %302 = vmatpush.msra.mxu0 %v90
    %303 = vmatmul.f32.gmra.mxu0 %v285
    %v304 = vpop.f32.mrf.mxu0
    %v305 = vadd.f32 0.0, %v304
    %306 = vdwg.mxu0
    %v309 = vrot.slane %v305, 7
    %v310 = vsel %vm184, %v309, %v278
    %vm312 = vcmask 254976
    %313 = vst.msk [vmem:[#allocation10] sm:$0x3] %vm312, %v310
    %v314 = vsel %vm184, %v284, %v256
    %316 = vst.msk [vmem:[#allocation11] sm:$0x3] %vm187, %v314
    // Predicated region
    $region42: #{tpu_custom_call.1} parent=1 // pred_check
      _
    $region43: #{tpu_custom_call.1} parent=1 // pred_check_branch
      %318 = sbr.rel (0) target = $region45
    $region44: #{tpu_custom_call.1} parent=1 // pred_region
      %320 = vsyncadd [#allocation4], 0
      %s322 = sshll.u32 [#allocation10], 4
      %s323 = int_to_ptr.vmem [resolvable:$true] %s322
      %s324 = sshll.u32 %s6, 4
      %s325 = int_to_ptr.hbm [resolvable:$true] %s324
      %327 = dma.vmem_to_hbm [thread:$0]  %s323, 32, %s325, [#allocation4]
    $region45: #{tpu_custom_call.1} parent=1 // pred_fallthru
      _
    // Predicated region
    $region46: #{tpu_custom_call.1} parent=1 // pred_check
      _
    $region47: #{tpu_custom_call.1} parent=1 // pred_check_branch
      %329 = sbr.rel (0) target = $region49
    $region48: #{tpu_custom_call.1} parent=1 // pred_region
      %331 = vsyncadd [#allocation12], 0
      %s333 = sshll.u32 [#allocation11], 4
      %s334 = int_to_ptr.vmem [resolvable:$true] %s333
      %s335 = sshll.u32 %s7, 4
      %s336 = int_to_ptr.hbm [resolvable:$true] %s335
      %338 = dma.vmem_to_hbm [thread:$0]  %s334, 32, %s336, [#allocation12]
    $region49: #{tpu_custom_call.1} parent=1 // pred_fallthru
      _
    // Predicated region
    $region50: #{tpu_custom_call.1} parent=1 // pred_check
      _
    $region51: #{tpu_custom_call.1} parent=1 // pred_check_branch
      %340 = sbr.rel (0) target = $region53
    $region52: #{tpu_custom_call.1} parent=1 // pred_region
      %342 = dma.done [#allocation4], 32
    $region53: #{tpu_custom_call.1} parent=1 // pred_fallthru
      _
    // Predicated region
    $region54: #{tpu_custom_call.1} parent=1 // pred_check
      _
    $region55: #{tpu_custom_call.1} parent=1 // pred_check_branch
      %344 = sbr.rel (0) target = $region57
    $region56: #{tpu_custom_call.1} parent=1 // pred_region
      %346 = dma.done [#allocation12], 32
    $region57: #{tpu_custom_call.1} parent=1 // pred_fallthru
      _
    %347 = vsyncpa [#allocation3], 1
    %348 = vsyncpa [#allocation6], 1
    %349 = vsyncpa [#allocation9], 1
    %350 = vsyncpa [#allocation4], 1
    %351 = vsyncpa [#allocation12], 1

</llo_original>
